<compile_context>
chip_gen: v6e
topology: v6e:2x2x1
jax: 0.10.0
libtpu: 0.0.40
codegen_flags: <defaults>
</compile_context>

<pallas_src>
import functools

import jax
import jax.numpy as jnp
from jax import lax
from jax.experimental import pallas as pl
from jax.experimental.pallas import tpu as pltpu


# ------------------------------- small helpers --------------------------------
def _round_up(a, m):
    return (a + m - 1) // m * m


def _pick_tile(total, candidates, prefer_multi=True):
    if prefer_multi:
        for c in candidates:
            if total % c == 0 and total // c >= 2:
                return c
    for c in candidates:
        if total % c == 0:
            return c
    return total


def _vmem_limit_bytes():
    try:
        cap = int(pltpu.get_tpu_info().vmem_capacity_bytes)
    except Exception:
        cap = 64 * 1024 * 1024
    return int(min(cap // 2, 48 * 1024 * 1024))


# ---------------------- kernel 1: hoisted input projection --------------------
def _proj_kernel(*refs, has_prev):
    if has_prev:
        x_ref, p_ref, wx_ref, wp_ref, b_ref, gx_ref = refs
    else:
        x_ref, wx_ref, b_ref, gx_ref = refs
        p_ref = wp_ref = None
    acc = jnp.dot(x_ref[...].astype(wx_ref.dtype), wx_ref[...],
                  preferred_element_type=jnp.float32)
    if has_prev:
        acc = acc + jnp.dot(p_ref[...].astype(wp_ref.dtype), wp_ref[...],
                            preferred_element_type=jnp.float32)
    gx_ref[...] = (acc + b_ref[...]).astype(gx_ref.dtype)


# --------------------------- kernel 2: GRU recurrence --------------------------
def _gru_kernel(gx_ref, h0_ref, whh_ref, bhh_ref, go_ref, hfin_ref, *,
                hp, ts, unroll):
    # gx_ref : [TS, Bp, 3Hp] bf16 (time-major chunk, streamed)
    # h0_ref : [Bp, Hp] f32, whh_ref: [Hp, 3Hp] bf16, bhh_ref: [1, 3Hp] f32
    # go_ref : [TS, Bp, Hp] bf16 ; hfin_ref: [Bp, Hp] f32 (resident carrier)
    @pl.when(pl.program_id(0) == 0)
    def _():
        hfin_ref[...] = h0_ref[...]

    bp = h0_ref.shape[0]
    whh = whh_ref[...]
    bhh = jnp.broadcast_to(bhh_ref[...].astype(jnp.float32), (bp, 3 * hp))

    # PyTorch nn.GRU gate order (r, z, n); gate math in f32, MXU in bf16.
    def step(i, h):
        gx = gx_ref[i].astype(jnp.float32)                               # [Bp,3Hp]
        gh = jnp.dot(h.astype(whh.dtype), whh,
                     preferred_element_type=jnp.float32) + bhh           # [Bp,3Hp]
        r = jax.nn.sigmoid(gx[:, 0 * hp:1 * hp] + gh[:, 0 * hp:1 * hp])
        z = jax.nn.sigmoid(gx[:, 1 * hp:2 * hp] + gh[:, 1 * hp:2 * hp])
        n = jnp.tanh(gx[:, 2 * hp:3 * hp] + r * gh[:, 2 * hp:3 * hp])
        h_new = (1.0 - z) * n + z * h
        go_ref[i] = h_new.astype(go_ref.dtype)
        return h_new

    h_last = lax.fori_loop(0, ts, step, hfin_ref[...], unroll=unroll)
    hfin_ref[...] = h_last


# --------------------------- kernel 3: routing heads ---------------------------
def _heads_kernel(go_ref, w1_ref, b1_ref, w2_ref, b2_ref, pk_ref, *,
                  num_experts, max_k, min_k, temperature):
    E, K = num_experts, max_k
    rows = go_ref.shape[0]

    go = go_ref[...]
    # fused first-layer matmul for the 3 heads: cols = [routing | comp-hid | topk-hid]
    fused = jnp.dot(go, w1_ref[...], preferred_element_type=jnp.float32) + b1_ref[...]
    logits = fused[:, :E] * (1.0 / temperature)
    hid = jnp.maximum(fused, 0.0)   # relu; logits columns are masked by zero w2 entries

    # width-1 second-layer heads on the VPU (broadcast-mul + lane reduce), no N=2 MXU op.
    comp = jax.nn.sigmoid(
        jnp.sum(hid * w2_ref[0:1, :], axis=-1, keepdims=True) + b2_ref[:, 0:1])
    tks = jax.nn.sigmoid(
        jnp.sum(hid * w2_ref[1:2, :], axis=-1, keepdims=True) + b2_ref[:, 1:2])

    # temperature softmax (exact divide for parity with the torch reference)
    mx = jnp.max(logits, axis=-1, keepdims=True)
    ex = jnp.exp(logits - mx)
    rw = ex / jnp.sum(ex, axis=-1, keepdims=True)

    # dynamic top-k count (exact-integer-valued float)
    dynk = jnp.round(float(min_k) + (0.7 * comp + 0.3 * tks) * float(K - min_k))

    # top-k via unrolled iterative argmax (K small; K <= E so no all -inf rows).
    # NOTE: the torch reference's dynamic_top_k.unsqueeze(-1) broadcast is only
    # valid for B == S (latent bug); we implement the intended per-token mask.
    ids = lax.broadcasted_iota(jnp.int32, rw.shape, 1)
    w = rw
    msum = jnp.zeros_like(comp)
    w_cols, i_cols = [], []
    for k in range(K):
        m = jnp.max(w, axis=-1, keepdims=True)
        idx = jnp.min(jnp.where(w == m, ids, E), axis=-1, keepdims=True)
        mk = m * (dynk > float(k)).astype(jnp.float32)
        msum = msum + mk
        w_cols.append(mk)
        i_cols.append(idx.astype(jnp.float32))   # indices < 2^24 -> exact as f32
        w = jnp.where(ids == idx, -jnp.inf, w)
    masked = jnp.concatenate(w_cols, axis=-1)                       # [TR, K]
    denom = jnp.where(msum > 0.0, msum, jnp.ones_like(msum))
    e_w = masked / denom
    top_i = jnp.concatenate(i_cols, axis=-1)                        # [TR, K] f32

    # single lane-dense (padded to 128) store for ALL outputs of this kernel
    used = E + 2 * K + 2
    pieces = [rw, e_w, comp, dynk, top_i]
    pad = pk_ref.shape[1] - used
    if pad > 0:
        pieces.append(jnp.zeros((rows, pad), jnp.float32))
    pk_ref[...] = jnp.concatenate(pieces, axis=-1)


# ------------------------------------ wrapper ----------------------------------
def rmoe_router_forward(x, params, *, num_experts, gru_hidden_dim, max_top_k,
                        min_top_k, temperature, load_balance_weight,
                        prev_routing=None, prev_hidden=None, mxu_bf16=True):
    """Single-layer RMoE routing step. x: [B, S, D] (batch-first, like torch)."""
    B, S, D = x.shape
    E, H, K = num_experts, gru_hidden_dim, max_top_k
    assert K <= E, "max_top_k must be <= num_experts"
    assert H % 4 == 0

    H2, H4 = H // 2, H // 4
    Hp = _round_up(H, 128)                 # lane-aligned gate width
    Bp = _round_up(B, 8)                   # sublane-aligned batch
    Fp = _round_up(E + H2 + H4, 128)       # fused head width, lane-aligned
    Wp = _round_up(E + 2 * K + 2, 128)     # packed output width, lane-dense
    R0 = B * S                             # batch-first flat rows
    Rp = S * Bp                            # time-major padded flat rows

    (wih, whh, bih, bhh,
     wc1, bc1, wc2, bc2,
     wr, br,
     wt1, bt1, wt2, bt2) = params

    mdt = jnp.bfloat16 if mxu_bf16 else jnp.float32   # MXU / inter-kernel dtype
    vmem_limit = _vmem_limit_bytes()

    # ---------------- weight packing (gate-aligned, lane-padded) --------------
    def pad_gates(w):   # [..., 3H] -> [..., 3Hp], gate g at [g*Hp : g*Hp+H]
        lead = w.shape[:-1]
        w3 = jnp.reshape(w, lead + (3, H))
        w3 = jnp.pad(w3, [(0, 0)] * len(lead) + [(0, 0), (0, Hp - H)])
        return jnp.reshape(w3, lead + (3 * Hp,))

    wih_x = pad_gates(wih[:D]).astype(mdt)                                  # [D, 3Hp]
    wih_p = pad_gates(wih[D:]).astype(mdt)                                  # [E, 3Hp]
    whh_p = jnp.pad(pad_gates(whh), ((0, Hp - H), (0, 0))).astype(mdt)      # [Hp,3Hp]
    bih_p = pad_gates(bih).astype(jnp.float32)                              # [1, 3Hp]
    bhh_p = pad_gates(bhh).astype(jnp.float32)                              # [1, 3Hp]

    w1f = jnp.concatenate([wr, wc1, wt1], axis=1)                           # [H, E+H2+H4]
    w1f = jnp.pad(w1f, ((0, Hp - H), (0, Fp - w1f.shape[1]))).astype(mdt)   # [Hp, Fp]
    b1f = jnp.concatenate([br, bc1, bt1], axis=1)
    b1f = jnp.pad(b1f, ((0, 0), (0, Fp - b1f.shape[1]))).astype(jnp.float32)
    w2_rows = jnp.zeros((2, Fp), jnp.float32)
    w2_rows = w2_rows.at[0, E:E + H2].set(wc2[:, 0])
    w2_rows = w2_rows.at[1, E + H2:E + H2 + H4].set(wt2[:, 0])
    b2f = jnp.concatenate([bc2, bt2], axis=1).astype(jnp.float32)           # [1, 2]

    if prev_hidden is None:
        h0 = jnp.zeros((B, H), jnp.float32)
    else:
        h0 = prev_hidden[0] if prev_hidden.ndim == 3 else prev_hidden
        h0 = h0.astype(jnp.float32)
    h0 = jnp.pad(h0, ((0, Bp - B), (0, Hp - H)))                            # [Bp, Hp]

    # ---------------- call 1: input projection (parallel grid) ----------------
    x_flat = x.astype(jnp.float32).reshape(R0, D)    # batch-first flat, NO transpose of x
    TR0 = _pick_tile(R0, (1024, 512, 256, 128, 64, 32, 16, 8))
    has_prev = prev_routing is not None
    proj = functools.partial(_proj_kernel, has_prev=has_prev)
    if has_prev:
        p_flat = prev_routing.astype(jnp.float32).reshape(R0, E)
        proj_args = (x_flat, p_flat, wih_x, wih_p, bih_p)
        proj_specs = [
            pl.BlockSpec((TR0, D), lambda i: (i, 0)),
            pl.BlockSpec((TR0, E), lambda i: (i, 0)),
            pl.BlockSpec((D, 3 * Hp), lambda i: (0, 0)),
            pl.BlockSpec((E, 3 * Hp), lambda i: (0, 0)),
            pl.BlockSpec((1, 3 * Hp), lambda i: (0, 0)),
        ]
    else:
        proj_args = (x_flat, wih_x, bih_p)
        proj_specs = [
            pl.BlockSpec((TR0, D), lambda i: (i, 0)),
            pl.BlockSpec((D, 3 * Hp), lambda i: (0, 0)),
            pl.BlockSpec((1, 3 * Hp), lambda i: (0, 0)),
        ]
    gx_bf = pl.pallas_call(
        proj,
        out_shape=jax.ShapeDtypeStruct((R0, 3 * Hp), mdt),
        grid=(R0 // TR0,),
        in_specs=proj_specs,
        out_specs=pl.BlockSpec((TR0, 3 * Hp), lambda i: (i, 0)),
        compiler_params=pltpu.CompilerParams(
            dimension_semantics=("parallel",), vmem_limit_bytes=vmem_limit),
    )(*proj_args)

    # reorder only gx (bf16) batch-first -> time-major, pad batch to Bp
    # TODO(synk): fold this reorder into the projection out_spec / a manual
    # strided DMA to remove the remaining HBM round trip of gx.
    gx_tm = jnp.transpose(gx_bf.reshape(B, S, 3 * Hp), (1, 0, 2))   # [S, B, 3Hp]
    if Bp != B:
        gx_tm = jnp.pad(gx_tm, ((0, 0), (0, Bp - B), (0, 0)))       # [S, Bp, 3Hp]

    # ---------------- call 2: GRU recurrence (streamed over time) -------------
    TS = _pick_tile(S, (64, 32, 16, 8, 4, 2, 1), prefer_multi=False)
    unroll = True if TS <= 16 else 8
    gru = functools.partial(_gru_kernel, hp=Hp, ts=TS, unroll=unroll)
    go_tm, hfin = pl.pallas_call(
        gru,
        out_shape=(jax.ShapeDtypeStruct((S, Bp, Hp), mdt),
                   jax.ShapeDtypeStruct((Bp, Hp), jnp.float32)),
        grid=(S // TS,),
        in_specs=[
            pl.BlockSpec((TS, Bp, 3 * Hp), lambda c: (c, 0, 0)),
            pl.BlockSpec((Bp, Hp), lambda c: (0, 0)),
            pl.BlockSpec((Hp, 3 * Hp), lambda c: (0, 0)),
            pl.BlockSpec((1, 3 * Hp), lambda c: (0, 0)),
        ],
        out_specs=(pl.BlockSpec((TS, Bp, Hp), lambda c: (c, 0, 0)),
                   pl.BlockSpec((Bp, Hp), lambda c: (0, 0))),
        compiler_params=pltpu.CompilerParams(
            dimension_semantics=("arbitrary",), vmem_limit_bytes=vmem_limit),
    )(gx_tm, h0, whh_p, bhh_p)

    # ---------------- call 3: routing heads (parallel grid) -------------------
    go_flat = go_tm.reshape(Rp, Hp)
    TR = _pick_tile(Rp, (2048, 1024, 512, 256, 128, 64, 32, 16, 8))
    heads = functools.partial(_heads_kernel, num_experts=E, max_k=K,
                              min_k=int(min_top_k), temperature=float(temperature))
    packed = pl.pallas_call(
        heads,
        out_shape=jax.ShapeDtypeStruct((Rp, Wp), jnp.float32),
        grid=(Rp // TR,),
        in_specs=[
            pl.BlockSpec((TR, Hp), lambda i: (i, 0)),
            pl.BlockSpec((Hp, Fp), lambda i: (0, 0)),
            pl.BlockSpec((1, Fp), lambda i: (0, 0)),
            pl.BlockSpec((2, Fp), lambda i: (0, 0)),
            pl.BlockSpec((1, 2), lambda i: (0, 0)),
        ],
        out_specs=pl.BlockSpec((TR, Wp), lambda i: (i, 0)),
        compiler_params=pltpu.CompilerParams(
            dimension_semantics=("parallel",), vmem_limit_bytes=vmem_limit),
    )(go_flat, w1f, b1f, w2_rows, b2f)

    # ---------------------- unpack back to batch-first ------------------------
    used = E + 2 * K + 2
    pk = packed[:, :used].reshape(S, Bp, used)[:, :B, :]     # drop batch padding
    pk = jnp.transpose(pk, (1, 0, 2))                        # [B, S, used]

    routing_weights = pk[..., :E]
    expert_weights = pk[..., E:E + K]
    complexity = pk[..., E + K:E + K + 1]
    dyn_k = pk[..., E + K + 1:E + K + 2].astype(jnp.int32)
    expert_indices = pk[..., E + K + 2:used].astype(jnp.int32)
    new_hidden = hfin[:B, :H][None, :, :]                    # [1, B, H]

    # ------------- auxiliary routing losses / stats (plain-JAX glue) ----------
    expert_usage = routing_weights.mean(axis=(0, 1))
    ideal = 1.0 / E
    load_balance_loss = jnp.mean((expert_usage - ideal) ** 2) * load_balance_weight
    complexity_reg_loss = jnp.mean(complexity ** 2) * 0.001
    consistency_loss = jnp.float32(0.0)  # TODO(synk): consistency_tracker path needs prev-layer Linear weights
    rw_c = jnp.clip(routing_weights, 1e-10, None)
    routing_entropy = jnp.mean(-jnp.sum(rw_c * jnp.log(rw_c), axis=-1))
    total = B * S * K
    utilization = jax.nn.one_hot(expert_indices, E, dtype=jnp.float32).sum(
        axis=(0, 1, 2)) / total

    state = {
        "routing_weights": routing_weights,
        "expert_indices": expert_indices,
        "expert_weights": expert_weights,
        "gru_hidden": new_hidden,
        "complexity_score": complexity,
    }
    info = {
        "avg_top_k": dyn_k.astype(jnp.float32).mean(),
        "avg_complexity": complexity.mean(),
        "expert_utilization": utilization,
        "routing_entropy": routing_entropy,
        "load_balance_loss": load_balance_loss,
        "consistency_loss": consistency_loss,
        "complexity_reg_loss": complexity_reg_loss,
    }
    return expert_weights, expert_indices, state, info


# ---------------------------- deterministic params -----------------------------
def make_params(key, input_dim, gru_hidden_dim, num_experts, scale=0.1):
    D, H, E = input_dim, gru_hidden_dim, num_experts
    shapes = [
        (D + E, 3 * H), (H, 3 * H), (1, 3 * H), (1, 3 * H),     # GRU
        (H, H // 2), (1, H // 2), (H // 2, 1), (1, 1),           # complexity head
        (H, E), (1, E),                                           # routing head
        (H, H // 4), (1, H // 4), (H // 4, 1), (1, 1),            # top-k head
    ]
    keys = jax.random.split(key, len(shapes))
    return tuple(scale * jax.random.normal(k, s, jnp.float32)
                 for k, s in zip(keys, shapes))


# TODO(synk): routing_history deque, consistency_tracker and checkpoint
# save/load are host-side / stateful and are not part of the device hot path.

if __name__ == "__main__":
    B, S, D = 2, 8, 32
    E, H, K_MAX, K_MIN = 8, 32, 4, 1

    key = jax.random.PRNGKey(0)
    kx, kp = jax.random.split(key)
    x = jax.random.normal(kx, (B, S, D), jnp.float32)
    params = make_params(kp, D, H, E)

    kwargs = dict(num_experts=E, gru_hidden_dim=H, max_top_k=K_MAX,
                  min_top_k=K_MIN, temperature=1.0, load_balance_weight=0.01)

    # layer 0 (no previous routing state)
    ew, ei, state, info = rmoe_router_forward(x, params, **kwargs)
    jax.block_until_ready((ew, ei, state["routing_weights"], info["routing_entropy"]))

    # layer 1 (recursive step: feed previous routing weights + GRU hidden)
    ew2, ei2, state2, info2 = rmoe_router_forward(
        x, params, prev_routing=state["routing_weights"],
        prev_hidden=state["gru_hidden"], **kwargs)
    jax.block_until_ready((ew2, ei2, state2["routing_weights"]))

    assert ew.shape == (B, S, K_MAX)
    assert ei.shape == (B, S, K_MAX)
    assert state["routing_weights"].shape == (B, S, E)
    assert state["gru_hidden"].shape == (1, B, H)
    assert ew2.shape == (B, S, K_MAX) and ei2.shape == (B, S, K_MAX)
    assert bool(jnp.all(jnp.abs(state["routing_weights"].sum(-1) - 1.0) < 1e-2))
    assert bool(jnp.all(jnp.abs(ew.sum(-1) - 1.0) < 1e-2))
    assert bool(jnp.all((ei >= 0) & (ei < E)))
    print("KERNEL_OK")
</pallas_src>

<mosaic_0001>
module attributes {stable_mosaic.version = 11 : i64} {
  func.func @_proj_kernel(%arg0: i32, %arg1: memref<8x32xf32, #tpu.memory_space<vmem>>, %arg2: memref<32x384xbf16, #tpu.memory_space<vmem>>, %arg3: memref<1x384xf32, #tpu.memory_space<vmem>>, %arg4: memref<8x384xbf16, #tpu.memory_space<vmem>>) attributes {dimension_semantics = [#tpu.dimension_semantics<parallel>], iteration_bounds = array<i64: 2>, scalar_prefetch = 0 : i64, scratch_operands = 0 : i64, tpu.core_type = #tpu.core_type<tc>, window_params = [{transform_indices = @transform_0, window_bounds = array<i64: 8, 32>}, {pipeline_mode = #tpu.pipeline_mode<synchronous>, transform_indices = @transform_1, window_bounds = array<i64: 32, 384>}, {pipeline_mode = #tpu.pipeline_mode<synchronous>, transform_indices = @transform_2, window_bounds = array<i64: 1, 384>}, {transform_indices = @transform_3, window_bounds = array<i64: 8, 384>}]} {
    %c0 = arith.constant 0 : index
    %c0_0 = arith.constant 0 : index
    %0 = vector.load %arg1[%c0, %c0_0] : memref<8x32xf32, #tpu.memory_space<vmem>>, vector<8x32xf32>
    %1 = arith.truncf %0 : vector<8x32xf32> to vector<8x32xbf16>
    %c0_1 = arith.constant 0 : index
    %c0_2 = arith.constant 0 : index
    %2 = vector.load %arg2[%c0_1, %c0_2] : memref<32x384xbf16, #tpu.memory_space<vmem>>, vector<32x384xbf16>
    %cst = arith.constant dense<0.000000e+00> : vector<8x384xf32>
    %3 = tpu.matmul %1, %2, %cst {dimension_numbers = #tpu.dot_dimension_numbers<[1], [0], [0], [1], [0, 0, 1, 1], [], []>} : vector<8x32xbf16>, vector<32x384xbf16>, vector<8x384xf32> -> vector<8x384xf32>
    %c0_3 = arith.constant 0 : index
    %c0_4 = arith.constant 0 : index
    %4 = vector.load %arg3[%c0_3, %c0_4] : memref<1x384xf32, #tpu.memory_space<vmem>>, vector<1x384xf32>
    %5 = vector.broadcast %4 : vector<1x384xf32> to vector<8x384xf32>
    %6 = arith.addf %3, %5 : vector<8x384xf32>
    %7 = arith.truncf %6 : vector<8x384xf32> to vector<8x384xbf16>
    %c0_5 = arith.constant 0 : index
    %c0_6 = arith.constant 0 : index
    %8 = vector.load %arg4[%c0_5, %c0_6] : memref<8x384xbf16, #tpu.memory_space<vmem>>, vector<8x384xbf16>
    tpu.vector_store %arg4[%c0_5, %c0_6], %7 {strides = array<i32>} : memref<8x384xbf16, #tpu.memory_space<vmem>>, vector<8x384xbf16>,
    return
  }
  func.func @transform_0(%arg0: i32) -> (i32, i32) {
    %c0_i32 = arith.constant 0 : i32
    %c0_i32_0 = arith.constant 0 : i32
    return %arg0, %c0_i32 : i32, i32
  }
  func.func @transform_1(%arg0: i32) -> (i32, i32) {
    %c0_i32 = arith.constant 0 : i32
    %c0_i32_0 = arith.constant 0 : i32
    %c0_i32_1 = arith.constant 0 : i32
    return %c0_i32, %c0_i32_0 : i32, i32
  }
  func.func @transform_2(%arg0: i32) -> (i32, i32) {
    %c0_i32 = arith.constant 0 : i32
    %c0_i32_0 = arith.constant 0 : i32
    %c0_i32_1 = arith.constant 0 : i32
    return %c0_i32, %c0_i32_0 : i32, i32
  }
  func.func @transform_3(%arg0: i32) -> (i32, i32) {
    %c0_i32 = arith.constant 0 : i32
    %c0_i32_0 = arith.constant 0 : i32
    return %arg0, %c0_i32 : i32, i32
  }
}

</mosaic_0001>

<llo_original>
// kernel: tpu_custom_call.1
$region0: #{tpu_custom_call.1}
  #allocation0 [shape = 'u32[]', space=smem, size = 0x4, offset = 0x4, fixed_abs, tag = 'smem constant byte address 0x4 - core index']
  #allocation1 [shape = 'u32[144,128]{1,0:T(1,128)}', space=vmem, size = 0x12000, scoped, tag = 'internal scratch']
  %s0 = inlined_call_operand.hbm [shape: f32[16,32], index: 0, kind: input, shape index: {}]
  %s1 = inlined_call_operand.hbm [shape: bf16[32,384], index: 1, kind: input, shape index: {}]
  %s2 = inlined_call_operand.vmem [shape: f32[1,384], index: 2, kind: input, shape index: {}]
  %s3 = inlined_call_operand.hbm [shape: bf16[16,384], index: 3, kind: output, shape index: {}]
  %s4 = sld [smem:[#allocation0]]
  $region53: #{tpu_custom_call.1} parent=0
    _
  %s6 = ssub.s32 1, %s4
  %s7 = scalar_select 0, %s6, %s4
  $region1: #{tpu_custom_call.1} parent=0
    #allocation2 [shape = 'u8[8192]{0}', space=vmem, size = 0x2000, scoped, tag = 'input window, operand 0']
    #allocation3 [shape = 's32[2]{0}', space=sflag, size = 0x8, scoped, tag = 'scoped memory for tpu_custom_call.1']
    #allocation4 [shape = 's32[2]{0}', space=sflag, size = 0x8, scoped, tag = 'scoped memory for tpu_custom_call.1']
    #allocation5 [shape = 'u8[24576]{0}', space=vmem, size = 0x6000, scoped, tag = 'input window, operand 1, single buffered']
    #allocation6 [shape = 's32[1]{0}', space=sflag, size = 0x4, scoped, tag = 'scoped memory for tpu_custom_call.1']
    #allocation7 [shape = 'u8[12288]{0}', space=vmem, size = 0x3000, scoped, tag = 'output window, operand 0']
    %8 = vsyncpa [#allocation3], 0
    %s9 = scalar_lea.sflag [#allocation3], 1
    %10 = vsyncpa %s9, 0
    %11 = vsyncpa [#allocation6], 0
    %12 = vsyncpa [#allocation4], 0
    %s13 = scalar_lea.sflag [#allocation4], 1
    %14 = vsyncpa %s13, 0
    loop: start=0, step=1, limit=4
    $region2: #{tpu_custom_call.1} parent=1 // loop_pre_header
      _
    $region3: #{tpu_custom_call.1} parent=1 // loop_header
      %s16 = sphi 0, %s20
      %p17 = scmp.ge.s32.totalorder %s16, 4
      %s26 = sphi 0, %s28
      %s29 = sphi 0, %s26
      %s30 = sphi 0, %s29
      %s46 = sphi 0, %s30
      %s50 = sphi 0, %s50
      %s52 = sphi 0, %s50
      %s53 = sphi 0, %s52
      %s67 = sphi 0, %s53
      %s71 = sphi 0, %s71
      %s73 = sphi 0, %s71
      %s74 = sphi 0, %s73
      %s88 = sphi 0, %s74
      %s94 = sphi 0, %s96
      %s97 = sphi 0, %s94
      %s98 = sphi 0, %s97
      %s114 = sphi 0, %s98
    $region4: #{tpu_custom_call.1} parent=1 // loop_header_branch
      %19 = sbr.rel (%p17) target = $region8
    $region5: #{tpu_custom_call.1} parent=1 // loop_body
      %s21 = ssub.s32 %s16, 1
      %s22 = ssub.s32 %s16, 2
      %s23 = sadd.s32 %s16, 1
      %s24 = ssub.s32 %s16, %s23
      %p25 = scmp.eq.s32.totalorder %s24, 0
      %s27 = sadd.s32 %s26, 1
      %s28 = scalar_select %p25, %s26, %s27
      %p31 = pneg %p25
      %p32 = scmp.eq.s32.totalorder %s16, 1
      %p33 = por %p31, %p32
      %p34 = scmp.ne.s32.totalorder %s26, %s29
      %p35 = scmp.eq.s32.totalorder %s16, 0
      %p36 = por %p34, %p35
      %p37 = scmp.ne.s32.totalorder %s26, %s29
      %p38 = scmp.eq.s32.totalorder %s21, 1
      %p39 = por %p37, %p38
      %p40 = scmp.ne.s32.totalorder %s29, %s30
      %p41 = scmp.eq.s32.totalorder %s21, 0
      %p42 = por %p40, %p41
      %p43 = scmp.ne.s32.totalorder %s29, %s30
      %p44 = scmp.eq.s32.totalorder %s22, 1
      %p45 = por %p43, %p44
      %p47 = scmp.ne.s32.totalorder %s30, %s46
      %p48 = scmp.eq.s32.totalorder %s22, 0
      %p49 = por %p47, %p48
      %s51 = sadd.s32 %s50, 1
      %p54 = scmp.eq.s32.totalorder %s16, 1
      %p55 = scmp.ne.s32.totalorder %s50, %s52
      %p56 = scmp.eq.s32.totalorder %s16, 0
      %p57 = por %p55, %p56
      %p58 = scmp.ne.s32.totalorder %s50, %s52
      %p59 = scmp.eq.s32.totalorder %s21, 1
      %p60 = por %p58, %p59
      %p61 = scmp.ne.s32.totalorder %s52, %s53
      %p62 = scmp.eq.s32.totalorder %s21, 0
      %p63 = por %p61, %p62
      %p64 = scmp.ne.s32.totalorder %s52, %s53
      %p65 = scmp.eq.s32.totalorder %s22, 1
      %p66 = por %p64, %p65
      %p68 = scmp.ne.s32.totalorder %s53, %s67
      %p69 = scmp.eq.s32.totalorder %s22, 0
      %p70 = por %p68, %p69
      %s72 = sadd.s32 %s71, 1
      %p75 = scmp.eq.s32.totalorder %s16, 1
      %p76 = scmp.ne.s32.totalorder %s71, %s73
      %p77 = scmp.eq.s32.totalorder %s16, 0
      %p78 = por %p76, %p77
      %p79 = scmp.ne.s32.totalorder %s71, %s73
      %p80 = scmp.eq.s32.totalorder %s21, 1
      %p81 = por %p79, %p80
      %p82 = scmp.ne.s32.totalorder %s73, %s74
      %p83 = scmp.eq.s32.totalorder %s21, 0
      %p84 = por %p82, %p83
      %p85 = scmp.ne.s32.totalorder %s73, %s74
      %p86 = scmp.eq.s32.totalorder %s22, 1
      %p87 = por %p85, %p86
      %p89 = scmp.ne.s32.totalorder %s74, %s88
      %p90 = scmp.eq.s32.totalorder %s22, 0
      %p91 = por %p89, %p90
      %s92 = ssub.s32 %s16, %s23
      %p93 = scmp.eq.s32.totalorder %s92, 0
      %s95 = sadd.s32 %s94, 1
      %s96 = scalar_select %p93, %s94, %s95
      %p99 = pneg %p93
      %p100 = scmp.eq.s32.totalorder %s16, 1
      %p101 = por %p99, %p100
      %p102 = scmp.ne.s32.totalorder %s94, %s97
      %p103 = scmp.eq.s32.totalorder %s16, 0
      %p104 = por %p102, %p103
      %p105 = scmp.ne.s32.totalorder %s94, %s97
      %p106 = scmp.eq.s32.totalorder %s21, 1
      %p107 = por %p105, %p106
      %p108 = scmp.ne.s32.totalorder %s97, %s98
      %p109 = scmp.eq.s32.totalorder %s21, 0
      %p110 = por %p108, %p109
      %p111 = scmp.ne.s32.totalorder %s97, %s98
      %p112 = scmp.eq.s32.totalorder %s22, 1
      %p113 = por %p111, %p112
      %p115 = scmp.ne.s32.totalorder %s98, %s114
      %p116 = scmp.eq.s32.totalorder %s22, 0
      %p117 = por %p115, %p116
      %p118 = scmp.le.s32.totalorder 1, %s16
      %p119 = scmp.lt.s32.totalorder %s16, 3
      %p120 = pnand %p118, %p119
      %p121 = pneg %p120
      // Predicated region
      $region9: #{tpu_custom_call.1} parent=5 // pred_check
        _
      $region10: #{tpu_custom_call.1} parent=5 // pred_check_branch
        %123 = sbr.rel (%p120) target = $region12
      $region11: #{tpu_custom_call.1} parent=5 // pred_region
        %s124 = ssub.s32 %s16, 1
        // Predicated region
        $region13: #{tpu_custom_call.1} parent=11 // pred_check
          %p125 = pneg %p63
        $region14: #{tpu_custom_call.1} parent=11 // pred_check_branch
          %127 = sbr.rel (%p125) target = $region16
        $region15: #{tpu_custom_call.1} parent=11 // pred_region
          %s129 = ssub.s32 768, 768
          %130 = vsyncadd [#allocation6], %s129
          %s131 = sshll.u32 [#allocation5], 4
          %s132 = int_to_ptr.vmem [resolvable:$true] %s131
          %137 = dma.hbm_to_vmem [thread:$0]  %s1, 768, %s132, [#allocation6], 192, 192, 12
        $region16: #{tpu_custom_call.1} parent=11 // pred_fallthru
          _
        // Predicated region
        $region17: #{tpu_custom_call.1} parent=11 // pred_check
          %p138 = pneg %p84
        $region18: #{tpu_custom_call.1} parent=11 // pred_check_branch
          %140 = sbr.rel (%p138) target = $region20
        $region19: #{tpu_custom_call.1} parent=11 // pred_region
          _
        $region20: #{tpu_custom_call.1} parent=11 // pred_fallthru
          _
      $region12: #{tpu_custom_call.1} parent=5 // pred_fallthru
        _
      %p141 = scmp.lt.s32.totalorder %s16, 2
      // Predicated region
      $region21: #{tpu_custom_call.1} parent=5 // pred_check
        %p142 = pneg %p141
      $region22: #{tpu_custom_call.1} parent=5 // pred_check_branch
        %144 = sbr.rel (%p142) target = $region24
      $region23: #{tpu_custom_call.1} parent=5 // pred_region
        // Predicated region
        $region25: #{tpu_custom_call.1} parent=23 // pred_check
          %p145 = pneg %p36
        $region26: #{tpu_custom_call.1} parent=23 // pred_check_branch
          %147 = sbr.rel (%p145) target = $region28
        $region27: #{tpu_custom_call.1} parent=23 // pred_region
          %s148 = sand.u32 %s26, 1
          %s149 = scalar_lea.sflag [#allocation3], %s148
          %s150 = sand.u32 %s26, 1
          %s151 = smul.addr %s150, 8
          %s152 = scalar_lea.vmem [#allocation2], %s151
          %s154 = ssub.s32 128, 128
          %155 = vsyncadd %s149, %s154
          %s156 = smul.addr %s16, 128
          %s157 = scalar_lea.hbm %s0, %s156
          %s159 = sshll.u32 %s152, 4
          %s160 = int_to_ptr.vmem [resolvable:$true] %s159
          %162 = dma.hbm_to_vmem [thread:$0]  %s157, 128, %s160, %s149
        $region28: #{tpu_custom_call.1} parent=23 // pred_fallthru
          _
      $region24: #{tpu_custom_call.1} parent=5 // pred_fallthru
        _
      %p163 = scmp.le.s32.totalorder 1, %s16
      %p164 = scmp.lt.s32.totalorder %s16, 3
      %p165 = pnand %p163, %p164
      %p166 = pneg %p165
      // Predicated region
      $region29: #{tpu_custom_call.1} parent=5 // pred_check
        _
      $region30: #{tpu_custom_call.1} parent=5 // pred_check_branch
        %168 = sbr.rel (%p165) target = $region32
      $region31: #{tpu_custom_call.1} parent=5 // pred_region
        %s169 = ssub.s32 %s16, 1
        %s170 = sand.u32 %s29, 1
        %s171 = scalar_lea.sflag [#allocation3], %s170
        %s172 = sand.u32 %s29, 1
        %s173 = smul.addr %s172, 8
        %s174 = scalar_lea.vmem [#allocation2], %s173
        // Predicated region
        $region33: #{tpu_custom_call.1} parent=31 // pred_check
          %p175 = pneg %p42
        $region34: #{tpu_custom_call.1} parent=31 // pred_check_branch
          %177 = sbr.rel (%p175) target = $region36
        $region35: #{tpu_custom_call.1} parent=31 // pred_region
          %178 = dma.done %s171, 128
        $region36: #{tpu_custom_call.1} parent=31 // pred_fallthru
          _
        // Predicated region
        $region37: #{tpu_custom_call.1} parent=31 // pred_check
          %p179 = pneg %p63
        $region38: #{tpu_custom_call.1} parent=31 // pred_check_branch
          %181 = sbr.rel (%p179) target = $region40
        $region39: #{tpu_custom_call.1} parent=31 // pred_region
          %182 = dma.done [#allocation6], 768
        $region40: #{tpu_custom_call.1} parent=31 // pred_fallthru
          _
        %s183 = sand.u32 %s29, 1
        %s184 = scalar_lea.sflag [#allocation3], %s183
        %s185 = sand.u32 %s29, 1
        %s186 = smul.addr %s185, 8
        %s187 = scalar_lea.vmem [#allocation2], %s186
        %p188 = pneg %p42
        %p189 = pneg %p39
        %p190 = pneg %p63
        %p191 = pneg %p60
        %p192 = pneg %p84
        %p193 = pneg %p81
        %p194 = pneg %p110
        %p195 = pneg %p107
        %s196 = sand.u32 %s97, 1
        %s197 = scalar_lea.sflag [#allocation4], %s196
        %s198 = sand.u32 %s97, 1
        %s199 = smul.addr %s198, 12
        %s200 = scalar_lea.vmem [#allocation7], %s199
        %v202 = vld [vmem:[%s174] sm:$0xff]
        %v203 = vpack.c.bf16 %v202, %v202
        %v204 = vld [vmem:[#allocation5] sm:$0xff]
        %v205 = vld [vmem:[#allocation5 + $0x8] sm:$0xf]
        %v206 = vld [vmem:[#allocation5 + $0xc] sm:$0xff]
        %v207 = vld [vmem:[#allocation5 + $0x14] sm:$0xf]
        %v208 = vld [vmem:[#allocation5 + $0x18] sm:$0xff]
        %v209 = vld [vmem:[#allocation5 + $0x20] sm:$0xf]
        %v210 = vld [vmem:[#allocation5 + $0x24] sm:$0xff]
        %v211 = vld [vmem:[#allocation5 + $0x2c] sm:$0xf]
        %v212 = vld [vmem:[%s2] sm:$0x7]
        %v214 = vlaneseq
        %v215 = vshrl.u32 %v214, 7
        %v216 = vsub.s32 0, %v215
        %v217 = vrot.slane %v212, %v216
        %v218 = vlaneseq
        %v219 = vshrl.u32 %v218, 7
        %v220 = vsub.s32 1, %v219
        %v221 = vrot.slane %v212, %v220
        %v222 = vlaneseq
        %v223 = vshrl.u32 %v222, 7
        %v224 = vsub.s32 2, %v223
        %v225 = vrot.slane %v212, %v224
        %v237 = vunpack.c.l.b16 %v204
        %v238 = vunpack.c.h.b16 %v204
        %v239 = vunpack.c.l.b16 %v205
        %v240 = vunpack.c.l.b16 %v206
        %v241 = vunpack.c.h.b16 %v206
        %v242 = vunpack.c.l.b16 %v207
        %v243 = vunpack.c.l.b16 %v208
        %v244 = vunpack.c.h.b16 %v208
        %v245 = vunpack.c.l.b16 %v209
        %v246 = vunpack.c.l.b16 %v210
        %v247 = vunpack.c.h.b16 %v210
        %v248 = vunpack.c.l.b16 %v211
        %v249 = vpack.c.b16 %v240, %v237
        %v250 = vpack.c.b16 %v241, %v238
        %v251 = vpack.c.b16 %v242, %v239
        %v252 = vpack.c.b16 %v246, %v243
        %v253 = vpack.c.b16 %v247, %v244
        %v254 = vpack.c.b16 %v248, %v245
        %vm261 = vcmask 261120
        %v263 = vsel %vm261, %v203, 0
        %265 = vmatprep.subr.bf16.mxu0 0
        %266 = vmatpush1.bf16.msra.mxu0 0
        %267 = vmatprep.subr.bf16.mxu0 0
        %268 = vmatpush1.bf16.msra.mxu0 0
        %269 = vmatprep.subr.bf16.mxu0 0
        %270 = vmatpush1.bf16.msra.mxu0 0
        %271 = vmatprep.subr.bf16.mxu0 0
        %272 = vmatpush1.bf16.msra.mxu0 0
        %273 = vmatprep.subr.bf16.mxu0 0
        %274 = vmatpush1.bf16.msra.mxu0 0
        %275 = vmatprep.subr.bf16.mxu0 0
        %276 = vmatpush1.bf16.msra.mxu0 0
        %277 = vmatprep.subr.bf16.mxu0 %v253
        %278 = vmatpush1.bf16.msra.mxu0 %v252
        %279 = vmatprep.subr.bf16.mxu0 %v250
        %280 = vmatpush1.bf16.msra.mxu0 %v249
        %281 = vmatprep.subr.bf16.mxu0 0
        %282 = vmatpush2.bf16.msra.mxu0 0
        %283 = vmatprep.subr.bf16.mxu0 0
        %284 = vmatpush2.bf16.msra.mxu0 0
        %285 = vmatprep.subr.bf16.mxu0 0
        %286 = vmatpush2.bf16.msra.mxu0 0
        %287 = vmatprep.subr.bf16.mxu0 0
        %288 = vmatpush2.bf16.msra.mxu0 0
        %289 = vmatprep.subr.bf16.mxu0 0
        %290 = vmatpush2.bf16.msra.mxu0 0
        %291 = vmatprep.subr.bf16.mxu0 0
        %292 = vmatpush2.bf16.msra.mxu0 0
        %293 = vmatprep.subr.bf16.mxu0 0
        %294 = vmatpush2.bf16.msra.mxu0 0
        %295 = vmatprep.subr.bf16.mxu0 0
        %296 = vmatpush2.bf16.msra.mxu0 0
        %297 = vmatprep.mubr.bf16.mxu0 0
        %298 = vmatmul.mubr.bf16.gmra.mxu0 %v263
        %v299 = vpop.f32.mrf.mxu0
        %v300 = vadd.f32 %v217, %v299
        %v301 = vpop.f32.mrf.mxu0
        %v302 = vadd.f32 %v221, %v301
        %v303 = vpop.f32.mrf.mxu0
        %v304 = vpop.f32.mrf.mxu0
        %305 = vdwg.mxu0
        %306 = vmatprep.subr.bf16.mxu0 0
        %307 = vmatpush1.bf16.msra.mxu0 0
        %308 = vmatprep.subr.bf16.mxu0 0
        %309 = vmatpush1.bf16.msra.mxu0 0
        %310 = vmatprep.subr.bf16.mxu0 0
        %311 = vmatpush1.bf16.msra.mxu0 0
        %312 = vmatprep.subr.bf16.mxu0 0
        %313 = vmatpush1.bf16.msra.mxu0 0
        %314 = vmatprep.subr.bf16.mxu0 0
        %315 = vmatpush1.bf16.msra.mxu0 0
        %316 = vmatprep.subr.bf16.mxu0 0
        %317 = vmatpush1.bf16.msra.mxu0 0
        %318 = vmatprep.subr.bf16.mxu0 0
        %319 = vmatpush1.bf16.msra.mxu0 %v254
        %320 = vmatprep.subr.bf16.mxu0 0
        %321 = vmatpush1.bf16.msra.mxu0 %v251
        %322 = vmatprep.subr.bf16.mxu0 0
        %323 = vmatpush2.bf16.msra.mxu0 0
        %324 = vmatprep.subr.bf16.mxu0 0
        %325 = vmatpush2.bf16.msra.mxu0 0
        %326 = vmatprep.subr.bf16.mxu0 0
        %327 = vmatpush2.bf16.msra.mxu0 0
        %328 = vmatprep.subr.bf16.mxu0 0
        %329 = vmatpush2.bf16.msra.mxu0 0
        %330 = vmatprep.subr.bf16.mxu0 0
        %331 = vmatpush2.bf16.msra.mxu0 0
        %332 = vmatprep.subr.bf16.mxu0 0
        %333 = vmatpush2.bf16.msra.mxu0 0
        %334 = vmatprep.subr.bf16.mxu0 0
        %335 = vmatpush2.bf16.msra.mxu0 0
        %336 = vmatprep.subr.bf16.mxu0 0
        %337 = vmatpush2.bf16.msra.mxu0 0
        %338 = vmatprep.mubr.bf16.mxu0 0
        %339 = vmatmul.mubr.bf16.gmra.mxu0 %v263
        %v340 = vpop.f32.mrf.mxu0
        %v341 = vadd.f32 %v225, %v340
        %v342 = vpop.f32.mrf.mxu0
        %v343 = vpop.f32.mrf.mxu0
        %v344 = vpop.f32.mrf.mxu0
        %345 = vdwg.mxu0
        %v346 = vpack.c.bf16 %v300, %v300
        %v347 = vpack.c.bf16 %v302, %v302
        %v348 = vpack.c.bf16 %v341, %v341
        %v352 = vunpack.c.l.b16 %v346
        %v353 = vunpack.c.l.b16 %v347
        %v354 = vunpack.c.l.b16 %v348
        %v355 = vpack.c.b16 %v353, %v352
        %v356 = vpack.c.b16 %v354, %v354
        %359 = vst [vmem:[%s200] sm:$0xff] %v355
        %360 = vst [vmem:[%s200 + $0x8] sm:$0xf] %v356
        %s361 = sand.u32 %s97, 1
        %s362 = scalar_lea.sflag [#allocation4], %s361
        %s363 = sand.u32 %s97, 1
        %s364 = smul.addr %s363, 12
        %s365 = scalar_lea.vmem [#allocation7], %s364
        // Predicated region
        $region41: #{tpu_custom_call.1} parent=31 // pred_check
          %p366 = pneg %p107
        $region42: #{tpu_custom_call.1} parent=31 // pred_check_branch
          %368 = sbr.rel (%p366) target = $region44
        $region43: #{tpu_custom_call.1} parent=31 // pred_region
          %s370 = ssub.s32 192, 192
          %371 = vsyncadd %s362, %s370
          %s372 = smul.addr %s21, 3
          %s373 = smul.addr %s372, 64
          %s374 = scalar_lea.hbm %s3, %s373
          %s376 = sshll.u32 %s365, 4
          %s377 = int_to_ptr.vmem [resolvable:$true] %s376
          %379 = dma.vmem_to_hbm [thread:$0]  %s377, 192, %s374, %s362
        $region44: #{tpu_custom_call.1} parent=31 // pred_fallthru
          _
      $region32: #{tpu_custom_call.1} parent=5 // pred_fallthru
        _
      %p380 = scmp.le.s32.totalorder 2, %s16
      // Predicated region
      $region45: #{tpu_custom_call.1} parent=5 // pred_check
        %p381 = pneg %p380
      $region46: #{tpu_custom_call.1} parent=5 // pred_check_branch
        %383 = sbr.rel (%p381) target = $region48
      $region47: #{tpu_custom_call.1} parent=5 // pred_region
        %s384 = ssub.s32 %s16, 2
        // Predicated region
        $region49: #{tpu_custom_call.1} parent=47 // pred_check
          %p385 = pneg %p113
        $region50: #{tpu_custom_call.1} parent=47 // pred_check_branch
          %387 = sbr.rel (%p385) target = $region52
        $region51: #{tpu_custom_call.1} parent=47 // pred_region
          %s388 = sand.u32 %s98, 1
          %s389 = scalar_lea.sflag [#allocation4], %s388
          %s390 = sand.u32 %s98, 1
          %s391 = smul.addr %s390, 12
          %s392 = scalar_lea.vmem [#allocation7], %s391
          %393 = dma.done %s389, 192
        $region52: #{tpu_custom_call.1} parent=47 // pred_fallthru
          _
      $region48: #{tpu_custom_call.1} parent=5 // pred_fallthru
        _
    $region6: #{tpu_custom_call.1} parent=1 // loop_footer
      %s20 = sadd.s32 1, %s16
    $region7: #{tpu_custom_call.1} parent=1 // loop_footer_branch
      %15 = sbr.rel target = $region3
    $region8: #{tpu_custom_call.1} parent=1 // loop_exit
      _
    %394 = vsyncpa [#allocation3], 1
    %s395 = scalar_lea.sflag [#allocation3], 1
    %396 = vsyncpa %s395, 1
    %397 = vsyncpa [#allocation6], 1
    %398 = vsyncpa [#allocation4], 1
    %s399 = scalar_lea.sflag [#allocation4], 1
    %400 = vsyncpa %s399, 1

</llo_original>
